<compile_context>
chip_gen: v6e
topology: v6e:2x2x1
jax: 0.10.0
libtpu: 0.0.40
codegen_flags: <defaults>
</compile_context>

<pallas_src>
import functools
import math

import jax
import jax.numpy as jnp
from jax.experimental import pallas as pl
from jax.experimental.pallas import tpu as pltpu


_VMEM_LIMIT_BYTES = 32 * 1024 * 1024   # explicit scoped-VMEM budget (fits v5e/v6e/v7x)
_LANE_TILE_CAP = 2048                  # max H*W lanes per tile (sweepable)
_TILE_VMEM_BUDGET = 12 * 1024 * 1024   # budget for the double-buffered streamed tiles


def _round_up(n, m):
    return ((n + m - 1) // m) * m


def _pick_bm(hw, cin, cout, itemsize):
    """Lane tile (multiple of 128) sized so the streamed tiles fit the VMEM budget."""
    bm_full = _round_up(hw, 128)
    per_lane = 2 * (cin + cout) * itemsize                    # conv: 2x (x tile + y tile)
    per_lane = max(per_lane, 2 * cin * itemsize + 4 * cin)    # GAP: 2x x tile + f32 scratch
    bm = (_TILE_VMEM_BUDGET // max(per_lane, 1)) // 128 * 128
    return int(max(128, min(_LANE_TILE_CAP, bm, bm_full)))


# ----------------------------- Pallas kernels -----------------------------

def _gap_kernel(x_ref, o_ref, acc_ref, *, hw, bm):
    # Global average pool over the (lane-mapped) H*W axis.
    # Per tile: full-width VPU accumulate into a (Cin, bm) f32 scratch.
    # Last tile: single XLU cross-lane reduce + scale, one (Cin, 1) store.
    # x_ref: (1, Cin, bm)   o_ref: (1, Cin, 1) f32   acc_ref: (Cin, bm) f32 scratch.
    t = pl.program_id(1)
    xt = x_ref[0].astype(jnp.float32)                                  # (Cin, bm)

    if hw % bm != 0:
        # Ragged tail: out-of-bounds lanes hold stale data; mask them (static emission).
        col = jax.lax.broadcasted_iota(jnp.int32, xt.shape, 1) + t * bm
        xt = jnp.where(col < hw, xt, 0.0)

    @pl.when(t == 0)
    def _():
        acc_ref[...] = jnp.zeros_like(acc_ref)

    acc_ref[...] += xt

    @pl.when(t == pl.num_programs(1) - 1)
    def _():
        o_ref[0] = jnp.sum(acc_ref[...], axis=-1, keepdims=True) * (1.0 / float(hw))


def _pw_conv_kernel(w_ref, b_ref, x_ref, o_ref):
    # Per-sample 1x1 conv on the MXU with f32 accumulation, bias add in f32.
    # w_ref: (1, Cout, Cin) compute dtype (per-sample aggregated weight, constant over t)
    # b_ref: (1, Cout, 1) f32    x_ref: (1, Cin, bm)    o_ref: (1, Cout, bm)
    # Ragged tail: any garbage in out-of-bounds x lanes only produces garbage in the matching
    # out-of-bounds output lanes, which Pallas clips on writeback (never stored to HBM).
    y = jnp.dot(w_ref[0], x_ref[0], preferred_element_type=jnp.float32) + b_ref[0]
    o_ref[0] = y.astype(o_ref.dtype)


# ----------------------------- Pallas wrappers -----------------------------

def global_avg_pool(xf, bm):
    """xf: (B, Cin, HW) -> (B, Cin) f32 means."""
    B, Cin, HW = xf.shape
    T = pl.cdiv(HW, bm)
    pooled = pl.pallas_call(
        functools.partial(_gap_kernel, hw=HW, bm=bm),
        out_shape=jax.ShapeDtypeStruct((B, Cin, 1), jnp.float32),
        grid=(B, T),
        in_specs=[pl.BlockSpec((1, Cin, bm), lambda b, t: (b, 0, t))],
        out_specs=pl.BlockSpec((1, Cin, 1), lambda b, t: (b, 0, 0)),
        scratch_shapes=[pltpu.VMEM((Cin, bm), jnp.float32)],
        compiler_params=pltpu.CompilerParams(
            dimension_semantics=("parallel", "arbitrary"),
            vmem_limit_bytes=_VMEM_LIMIT_BYTES),
    )(xf)
    return pooled[:, :, 0]


def dynamic_pointwise_conv(xf, w_agg, b_agg, bm):
    """xf: (B, Cin, HW); w_agg: (Bw, Cout, Cin) compute dtype; b_agg: (Bw, Cout, 1) f32.

    Bw is B (per-sample aggregated weights, K>1) or 1 (shared weight, K==1)."""
    B, Cin, HW = xf.shape
    Bw, Cout, _ = w_agg.shape
    T = pl.cdiv(HW, bm)

    if Bw > 1:
        w_map = lambda b, t: (b, 0, 0)
    else:
        w_map = lambda b, t: (0, 0, 0)

    return pl.pallas_call(
        _pw_conv_kernel,
        out_shape=jax.ShapeDtypeStruct((B, Cout, HW), xf.dtype),
        grid=(B, T),
        in_specs=[
            pl.BlockSpec((1, Cout, Cin), w_map),               # aggregated weight (per sample)
            pl.BlockSpec((1, Cout, 1), w_map),                 # aggregated bias (f32)
            pl.BlockSpec((1, Cin, bm), lambda b, t: (b, 0, t)),  # x tile (lane-dense)
        ],
        out_specs=pl.BlockSpec((1, Cout, bm), lambda b, t: (b, 0, t)),
        compiler_params=pltpu.CompilerParams(
            dimension_semantics=("parallel", "parallel"),
            vmem_limit_bytes=_VMEM_LIMIT_BYTES),
    )(w_agg, b_agg, xf)


# ----------------------------- full forward -----------------------------

@functools.partial(jax.jit, static_argnames=("compute_dtype",))
def dconv_forward(x, params, compute_dtype=jnp.bfloat16):
    """x: (B, Cin, H, W) NCHW -> (B, Cout, H, W) NCHW (in compute_dtype)."""
    B, Cin, H, W = x.shape
    HW = H * W
    weight = params['agg_w']                    # (K, Cout, Cin) f32
    bias = params['agg_b']                      # (K, Cout) f32
    K, Cout, _ = weight.shape

    cdt = jnp.dtype(compute_dtype)
    xf = x.reshape(B, Cin, HW).astype(cdt)      # bf16 data path: halves HBM traffic for x/y
    bm = _pick_bm(HW, Cin, Cout, cdt.itemsize)
    hp = jax.lax.Precision.HIGHEST

    if K > 1:
        # KernelAttention: GAP (Pallas) + tiny MLP (plain JAX, f32, exact-erf GELU).
        pooled = global_avg_pool(xf, bm)                                          # (B, Cin) f32
        h = jnp.dot(pooled, params['att_w1'], precision=hp)
        h = h * params['att_bn_s'] + params['att_bn_b']                           # folded BN
        h = jax.nn.gelu(h, approximate=False)                                     # exact GELU
        logits = jnp.dot(h, params['att_w2'], precision=hp) + params['att_b2']
        attn = jax.nn.sigmoid(logits)                                             # (B, K) f32
        # Hoisted per-sample kernel aggregation (f32, tiny) -- done once per sample here,
        # not once per HW tile inside the kernel.
        w_agg = jnp.einsum('bk,koc->boc', attn, weight, precision=hp).astype(cdt)  # (B,Cout,Cin)
        b_agg = jnp.einsum('bk,ko->bo', attn, bias, precision=hp)[..., None]       # (B,Cout,1)
    else:
        # num_kernels == 1 -> plain conv branch of DConv (shared weight for all samples).
        w_agg = weight.astype(cdt)              # (1, Cout, Cin)
        b_agg = bias[..., None]                 # (1, Cout, 1) f32

    y = dynamic_pointwise_conv(xf, w_agg, b_agg, bm)
    return y.reshape(B, Cout, H, W)


# ----------------------------- reference (pure JAX) -----------------------------

def dconv_reference(x, params, compute_dtype=jnp.bfloat16):
    weight = params['agg_w']                    # (K, Cout, Cin)
    bias = params['agg_b']                      # (K, Cout)
    K = weight.shape[0]
    B = x.shape[0]
    cdt = jnp.dtype(compute_dtype)
    hp = jax.lax.Precision.HIGHEST

    xc = x.astype(cdt)                          # mimic the kernel's bf16 data path
    if K > 1:
        pooled = xc.astype(jnp.float32).mean(axis=(2, 3))
        h = jnp.dot(pooled, params['att_w1'], precision=hp)
        h = h * params['att_bn_s'] + params['att_bn_b']
        h = jax.nn.gelu(h, approximate=False)
        attn = jax.nn.sigmoid(jnp.dot(h, params['att_w2'], precision=hp) + params['att_b2'])
    else:
        attn = jnp.ones((B, 1), jnp.float32)
    w_agg = jnp.einsum('bk,koc->boc', attn, weight, precision=hp).astype(cdt)
    b_agg = jnp.einsum('bk,ko->bo', attn, bias, precision=hp)
    y = jnp.einsum('boc,bchw->bohw', w_agg.astype(jnp.float32), xc.astype(jnp.float32),
                   precision=hp)
    y = y + b_agg[:, :, None, None]
    return y.astype(cdt)


# ----------------------------- params -----------------------------

def init_params(key, in_channels, out_channels, num_kernels=4, reduction=4):
    ks = jax.random.split(key, 8)

    def uniform(k, shape, fan_in):
        bound = math.sqrt(6.0 / fan_in)         # kaiming_uniform-style
        return jax.random.uniform(k, shape, jnp.float32, -bound, bound)

    p = {
        # KernelAggregation weight (K, Cout, Cin, 1, 1) -> (K, Cout, Cin)
        'agg_w': uniform(ks[0], (num_kernels, out_channels, in_channels), in_channels),
        # torch inits the aggregation bias to zeros; small random here so the path is exercised
        'agg_b': 0.1 * jax.random.normal(ks[1], (num_kernels, out_channels), jnp.float32),
    }
    if num_kernels > 1:
        mid = in_channels // reduction if in_channels != 3 else num_kernels
        p['att_w1'] = uniform(ks[2], (in_channels, mid), in_channels)     # conv1 (no bias)
        gamma = 1.0 + 0.1 * jax.random.normal(ks[3], (mid,), jnp.float32)
        beta = 0.1 * jax.random.normal(ks[4], (mid,), jnp.float32)
        run_mean = jnp.zeros((mid,), jnp.float32)
        run_var = jnp.ones((mid,), jnp.float32)
        scale = gamma * jax.lax.rsqrt(run_var + 1e-5)
        p['att_bn_s'] = scale
        p['att_bn_b'] = beta - run_mean * scale
        p['att_w2'] = uniform(ks[5], (mid, num_kernels), mid)             # conv2
        p['att_b2'] = jnp.zeros((num_kernels,), jnp.float32)              # torch: constant 0
    return p


# ----------------------------- demo / check -----------------------------

def _check_close(y, ref, rtol=2e-2, atol=2e-2):
    y32 = jnp.asarray(y, jnp.float32)
    r32 = jnp.asarray(ref, jnp.float32)
    err = jnp.abs(y32 - r32)
    tol = atol + rtol * jnp.abs(r32)
    worst = float(jnp.max(err - tol))
    assert worst <= 0.0, f"max abs error {float(jnp.max(err))}"


if __name__ == "__main__":
    key = jax.random.PRNGKey(0)
    k_x, k_x2, k_p1, k_p2 = jax.random.split(key, 4)

    B, Cin, H, W = 2, 32, 16, 16
    Cout, K = 64, 4
    x = jax.random.normal(k_x, (B, Cin, H, W), jnp.float32)

    # Dynamic path (num_kernels > 1 -> DynamicKernelAggregation).
    params_dyn = init_params(k_p1, Cin, Cout, num_kernels=K)
    y_dyn = dconv_forward(x, params_dyn)

    # Plain-conv path (num_kernels == 1).
    params_one = init_params(k_p2, Cin, Cout, num_kernels=1)
    y_one = dconv_forward(x, params_one)

    # Ragged spatial size (H*W not a multiple of 128) -> exercises masked GAP tail and
    # clipped output writeback (no pad/unpad copies).
    x_rag = jax.random.normal(k_x2, (B, Cin, 9, 9), jnp.float32)
    y_rag = dconv_forward(x_rag, params_dyn)

    jax.block_until_ready((y_dyn, y_one, y_rag))
    assert y_dyn.shape == (B, Cout, H, W), y_dyn.shape
    assert y_one.shape == (B, Cout, H, W), y_one.shape
    assert y_rag.shape == (B, Cout, 9, 9), y_rag.shape

    # Numerical sanity checks against a pure-JAX reference at matching precision.
    _check_close(y_dyn, dconv_reference(x, params_dyn))
    _check_close(y_one, dconv_reference(x, params_one))
    _check_close(y_rag, dconv_reference(x_rag, params_dyn))

    print("KERNEL_OK")
</pallas_src>

<mosaic_0001>
module attributes {stable_mosaic.version = 11 : i64} {
  func.func @_gap_kernel(%arg0: i32, %arg1: i32, %arg2: memref<1x32x256xbf16, #tpu.memory_space<vmem>>, %arg3: memref<1x32x1xf32, #tpu.memory_space<vmem>>, %arg4: memref<32x256xf32, #tpu.memory_space<vmem>>) attributes {dimension_semantics = [#tpu.dimension_semantics<parallel>, #tpu.dimension_semantics<arbitrary>], iteration_bounds = array<i64: 2, 1>, scalar_prefetch = 0 : i64, scratch_operands = 1 : i64, tpu.core_type = #tpu.core_type<tc>, window_params = [{transform_indices = @transform_0, window_bounds = array<i64: 1, 32, 256>}, {transform_indices = @transform_1, window_bounds = array<i64: 1, 32, 1>}]} {
    %c0 = arith.constant 0 : index
    %c0_0 = arith.constant 0 : index
    %c0_1 = arith.constant 0 : index
    %0 = vector.load %arg2[%c0, %c0_0, %c0_1] : memref<1x32x256xbf16, #tpu.memory_space<vmem>>, vector<1x32x256xbf16>
    %1 = vector.shape_cast %0 : vector<1x32x256xbf16> to vector<32x256xbf16>
    %2 = arith.extf %1 : vector<32x256xbf16> to vector<32x256xf32>
    %c0_i32 = arith.constant 0 : i32
    %3 = arith.cmpi eq, %arg1, %c0_i32 : i32
    %4 = arith.extui %3 : i1 to i32
    %c0_i32_2 = arith.constant 0 : i32
    %5 = arith.cmpi ne, %4, %c0_i32_2 : i32
    scf.if %5 {
      %cst = arith.constant 0.000000e+00 : f32
      %12 = vector.broadcast %cst : f32 to vector<32x256xf32>
      %c0_9 = arith.constant 0 : index
      %c0_10 = arith.constant 0 : index
      %13 = vector.load %arg4[%c0_9, %c0_10] : memref<32x256xf32, #tpu.memory_space<vmem>>, vector<32x256xf32>
      tpu.vector_store %arg4[%c0_9, %c0_10], %12 {strides = array<i32>} : memref<32x256xf32, #tpu.memory_space<vmem>>, vector<32x256xf32>,
    } else {
    }
    %c0_3 = arith.constant 0 : index
    %c0_4 = arith.constant 0 : index
    %6 = vector.load %arg4[%c0_3, %c0_4] : memref<32x256xf32, #tpu.memory_space<vmem>>, vector<32x256xf32>
    %7 = arith.addf %6, %2 : vector<32x256xf32>
    %c0_5 = arith.constant 0 : index
    %c0_6 = arith.constant 0 : index
    %8 = vector.load %arg4[%c0_5, %c0_6] : memref<32x256xf32, #tpu.memory_space<vmem>>, vector<32x256xf32>
    tpu.vector_store %arg4[%c0_5, %c0_6], %7 {strides = array<i32>} : memref<32x256xf32, #tpu.memory_space<vmem>>, vector<32x256xf32>,
    %c0_i32_7 = arith.constant 0 : i32
    %9 = arith.cmpi eq, %arg1, %c0_i32_7 : i32
    %10 = arith.extui %9 : i1 to i32
    %c0_i32_8 = arith.constant 0 : i32
    %11 = arith.cmpi ne, %10, %c0_i32_8 : i32
    scf.if %11 {
      %c0_9 = arith.constant 0 : index
      %c0_10 = arith.constant 0 : index
      %12 = vector.load %arg4[%c0_9, %c0_10] : memref<32x256xf32, #tpu.memory_space<vmem>>, vector<32x256xf32>
      %cst = arith.constant dense<0.000000e+00> : vector<32xf32>
      %13 = vector.multi_reduction <add>, %12, %cst [1] : vector<32x256xf32> to vector<32xf32>
      %14 = vector.shape_cast %13 : vector<32xf32> to vector<32x1xf32>
      %cst_11 = arith.constant 3.906250e-03 : f32
      %15 = vector.broadcast %cst_11 : f32 to vector<32x1xf32>
      %16 = arith.mulf %14, %15 : vector<32x1xf32>
      %c0_12 = arith.constant 0 : index
      %c0_13 = arith.constant 0 : index
      %c0_14 = arith.constant 0 : index
      %17 = vector.load %arg3[%c0_12, %c0_13, %c0_14] : memref<1x32x1xf32, #tpu.memory_space<vmem>>, vector<1x32x1xf32>
      %18 = vector.shape_cast %17 : vector<1x32x1xf32> to vector<32x1xf32>
      %19 = vector.shape_cast %16 : vector<32x1xf32> to vector<1x32x1xf32>
      tpu.vector_store %arg3[%c0_12, %c0_13, %c0_14], %19 {strides = array<i32>} : memref<1x32x1xf32, #tpu.memory_space<vmem>>, vector<1x32x1xf32>,
    } else {
    }
    return
  }
  func.func @transform_0(%arg0: i32, %arg1: i32) -> (i32, i32, i32) {
    %c0_i32 = arith.constant 0 : i32
    %c0_i32_0 = arith.constant 0 : i32
    return %arg0, %c0_i32, %arg1 : i32, i32, i32
  }
  func.func @transform_1(%arg0: i32, %arg1: i32) -> (i32, i32, i32) {
    %c0_i32 = arith.constant 0 : i32
    %c0_i32_0 = arith.constant 0 : i32
    %c0_i32_1 = arith.constant 0 : i32
    return %arg0, %c0_i32, %c0_i32_0 : i32, i32, i32
  }
}

module attributes {stable_mosaic.version = 11 : i64} {
  func.func @_pw_conv_kernel(%arg0: i32, %arg1: i32, %arg2: memref<1x64x32xbf16, #tpu.memory_space<vmem>>, %arg3: memref<1x64x1xf32, #tpu.memory_space<vmem>>, %arg4: memref<1x32x256xbf16, #tpu.memory_space<vmem>>, %arg5: memref<1x64x256xbf16, #tpu.memory_space<vmem>>) attributes {dimension_semantics = [#tpu.dimension_semantics<parallel>, #tpu.dimension_semantics<parallel>], iteration_bounds = array<i64: 2, 1>, scalar_prefetch = 0 : i64, scratch_operands = 0 : i64, tpu.core_type = #tpu.core_type<tc>, window_params = [{transform_indices = @transform_0, window_bounds = array<i64: 1, 64, 32>}, {transform_indices = @transform_1, window_bounds = array<i64: 1, 64, 1>}, {transform_indices = @transform_2, window_bounds = array<i64: 1, 32, 256>}, {transform_indices = @transform_3, window_bounds = array<i64: 1, 64, 256>}]} {
    %c0 = arith.constant 0 : index
    %c0_0 = arith.constant 0 : index
    %c0_1 = arith.constant 0 : index
    %0 = vector.load %arg2[%c0, %c0_0, %c0_1] : memref<1x64x32xbf16, #tpu.memory_space<vmem>>, vector<1x64x32xbf16>
    %1 = vector.shape_cast %0 : vector<1x64x32xbf16> to vector<64x32xbf16>
    %c0_2 = arith.constant 0 : index
    %c0_3 = arith.constant 0 : index
    %c0_4 = arith.constant 0 : index
    %2 = vector.load %arg4[%c0_2, %c0_3, %c0_4] : memref<1x32x256xbf16, #tpu.memory_space<vmem>>, vector<1x32x256xbf16>
    %3 = vector.shape_cast %2 : vector<1x32x256xbf16> to vector<32x256xbf16>
    %cst = arith.constant dense<0.000000e+00> : vector<64x256xf32>
    %4 = tpu.matmul %1, %3, %cst {dimension_numbers = #tpu.dot_dimension_numbers<[1], [0], [0], [1], [0, 0, 1, 1], [], []>} : vector<64x32xbf16>, vector<32x256xbf16>, vector<64x256xf32> -> vector<64x256xf32>
    %c0_5 = arith.constant 0 : index
    %c0_6 = arith.constant 0 : index
    %c0_7 = arith.constant 0 : index
    %5 = vector.load %arg3[%c0_5, %c0_6, %c0_7] : memref<1x64x1xf32, #tpu.memory_space<vmem>>, vector<1x64x1xf32>
    %6 = vector.shape_cast %5 : vector<1x64x1xf32> to vector<64x1xf32>
    %7 = vector.broadcast %6 : vector<64x1xf32> to vector<64x256xf32>
    %8 = arith.addf %4, %7 : vector<64x256xf32>
    %9 = arith.truncf %8 : vector<64x256xf32> to vector<64x256xbf16>
    %c0_8 = arith.constant 0 : index
    %c0_9 = arith.constant 0 : index
    %c0_10 = arith.constant 0 : index
    %10 = vector.load %arg5[%c0_8, %c0_9, %c0_10] : memref<1x64x256xbf16, #tpu.memory_space<vmem>>, vector<1x64x256xbf16>
    %11 = vector.shape_cast %10 : vector<1x64x256xbf16> to vector<64x256xbf16>
    %12 = vector.shape_cast %9 : vector<64x256xbf16> to vector<1x64x256xbf16>
    tpu.vector_store %arg5[%c0_8, %c0_9, %c0_10], %12 {strides = array<i32>} : memref<1x64x256xbf16, #tpu.memory_space<vmem>>, vector<1x64x256xbf16>,
    return
  }
  func.func @transform_0(%arg0: i32, %arg1: i32) -> (i32, i32, i32) {
    %c0_i32 = arith.constant 0 : i32
    %c0_i32_0 = arith.constant 0 : i32
    %c0_i32_1 = arith.constant 0 : i32
    return %arg0, %c0_i32, %c0_i32_0 : i32, i32, i32
  }
  func.func @transform_1(%arg0: i32, %arg1: i32) -> (i32, i32, i32) {
    %c0_i32 = arith.constant 0 : i32
    %c0_i32_0 = arith.constant 0 : i32
    %c0_i32_1 = arith.constant 0 : i32
    return %arg0, %c0_i32, %c0_i32_0 : i32, i32, i32
  }
  func.func @transform_2(%arg0: i32, %arg1: i32) -> (i32, i32, i32) {
    %c0_i32 = arith.constant 0 : i32
    %c0_i32_0 = arith.constant 0 : i32
    return %arg0, %c0_i32, %arg1 : i32, i32, i32
  }
  func.func @transform_3(%arg0: i32, %arg1: i32) -> (i32, i32, i32) {
    %c0_i32 = arith.constant 0 : i32
    %c0_i32_0 = arith.constant 0 : i32
    return %arg0, %c0_i32, %arg1 : i32, i32, i32
  }
}

</mosaic_0001>

<llo_original>
// kernel: dconv_forward.2
$region0: #{dconv_forward.2}
  #allocation0 [shape = 'u32[]', space=smem, size = 0x4, offset = 0x4, fixed_abs, tag = 'smem constant byte address 0x4 - core index']
  #allocation1 [shape = 'u32[144,128]{1,0:T(1,128)}', space=vmem, size = 0x12000, scoped, tag = 'internal scratch']
  #allocation2 [shape = 'f32[32,256]{1,0:T(8,128)}', space=vmem, size = 0x8000, scoped, tag = 'scratch operand']
  %s0 = inlined_call_operand.vmem [shape: bf16[2,32,256], index: 0, kind: input, shape index: {}]
  %s1 = inlined_call_operand.vmem [shape: f32[2,32,1], index: 1, kind: output, shape index: {}]
  %s2 = sld [smem:[#allocation0]]
  $region45: #{dconv_forward.2} parent=0
    _
  %s4 = ssub.s32 1, %s2
  %s5 = scalar_select 0, %s4, %s2
  loop: start=0, step=1, limit=4
  $region2: #{dconv_forward.2} parent=0 // loop_pre_header
    _
  $region3: #{dconv_forward.2} parent=0 // loop_header
    %s7 = sphi 0, %s11
    %p8 = scmp.ge.s32.totalorder %s7, 4
    %s14 = sphi 0, %s26
    %s15 = sphi 0, %s22
    %s16 = sphi 0, %s14
    %s17 = sphi 0, %s15
    %s18 = sphi 0, %s16
    %s19 = sphi 0, %s17
    %s31 = sphi 0, %s33
    %s34 = sphi 0, %s31
    %s35 = sphi 0, %s34
    %s51 = sphi 0, %s35
    %s57 = sphi 0, %s59
    %s60 = sphi 0, %s57
    %s61 = sphi 0, %s60
    %s77 = sphi 0, %s61
  $region4: #{dconv_forward.2} parent=0 // loop_header_branch
    %10 = sbr.rel (%p8) target = $region8
  $region5: #{dconv_forward.2} parent=0 // loop_body
    %s12 = ssub.s32 %s7, 1
    %s13 = ssub.s32 %s7, 2
    %s20 = sadd.s32 1, %s15
    %p21 = scmp.ge.s32.totalorder %s20, 1
    %s22 = scalar_select %p21, 0, %s20
    %s23 = sadd.s32 1, %s14
    %s24 = scalar_select %p21, %s23, %s14
    %p25 = scmp.ge.s32.totalorder %s24, 2
    %s26 = scalar_select %p25, 0, %s24
    %s27 = ssub.s32 %s14, %s26
    %s28 = ssub.s32 %s15, %s22
    %s29 = sor.u32 %s27, %s28
    %p30 = scmp.eq.s32.totalorder %s29, 0
    %s32 = sadd.s32 %s31, 1
    %s33 = scalar_select %p30, %s31, %s32
    %p36 = pneg %p30
    %p37 = scmp.eq.s32.totalorder %s7, 1
    %p38 = por %p36, %p37
    %p39 = scmp.ne.s32.totalorder %s31, %s34
    %p40 = scmp.eq.s32.totalorder %s7, 0
    %p41 = por %p39, %p40
    %p42 = scmp.ne.s32.totalorder %s31, %s34
    %p43 = scmp.eq.s32.totalorder %s12, 1
    %p44 = por %p42, %p43
    %p45 = scmp.ne.s32.totalorder %s34, %s35
    %p46 = scmp.eq.s32.totalorder %s12, 0
    %p47 = por %p45, %p46
    %p48 = scmp.ne.s32.totalorder %s34, %s35
    %p49 = scmp.eq.s32.totalorder %s13, 1
    %p50 = por %p48, %p49
    %p52 = scmp.ne.s32.totalorder %s35, %s51
    %p53 = scmp.eq.s32.totalorder %s13, 0
    %p54 = por %p52, %p53
    %s55 = ssub.s32 %s14, %s26
    %p56 = scmp.eq.s32.totalorder %s55, 0
    %s58 = sadd.s32 %s57, 1
    %s59 = scalar_select %p56, %s57, %s58
    %p62 = pneg %p56
    %p63 = scmp.eq.s32.totalorder %s7, 1
    %p64 = por %p62, %p63
    %p65 = scmp.ne.s32.totalorder %s57, %s60
    %p66 = scmp.eq.s32.totalorder %s7, 0
    %p67 = por %p65, %p66
    %p68 = scmp.ne.s32.totalorder %s57, %s60
    %p69 = scmp.eq.s32.totalorder %s12, 1
    %p70 = por %p68, %p69
    %p71 = scmp.ne.s32.totalorder %s60, %s61
    %p72 = scmp.eq.s32.totalorder %s12, 0
    %p73 = por %p71, %p72
    %p74 = scmp.ne.s32.totalorder %s60, %s61
    %p75 = scmp.eq.s32.totalorder %s13, 1
    %p76 = por %p74, %p75
    %p78 = scmp.ne.s32.totalorder %s61, %s77
    %p79 = scmp.eq.s32.totalorder %s13, 0
    %p80 = por %p78, %p79
    %p81 = scmp.le.s32.totalorder 1, %s7
    %p82 = scmp.lt.s32.totalorder %s7, 3
    %p83 = pnand %p81, %p82
    %p84 = pneg %p83
    // Predicated region
    $region9: #{dconv_forward.2} parent=5 // pred_check
      _
    $region10: #{dconv_forward.2} parent=5 // pred_check_branch
      %86 = sbr.rel (%p83) target = $region12
    $region11: #{dconv_forward.2} parent=5 // pred_region
      %s87 = ssub.s32 %s7, 1
    $region12: #{dconv_forward.2} parent=5 // pred_fallthru
      _
    %p88 = scmp.lt.s32.totalorder %s7, 2
    // Predicated region
    $region13: #{dconv_forward.2} parent=5 // pred_check
      %p89 = pneg %p88
    $region14: #{dconv_forward.2} parent=5 // pred_check_branch
      %91 = sbr.rel (%p89) target = $region16
    $region15: #{dconv_forward.2} parent=5 // pred_region
      // Predicated region
      $region17: #{dconv_forward.2} parent=15 // pred_check
        %p92 = pneg %p41
      $region18: #{dconv_forward.2} parent=15 // pred_check_branch
        %94 = sbr.rel (%p92) target = $region20
      $region19: #{dconv_forward.2} parent=15 // pred_region
        %s95 = smul.u32 2, %s15
        %p96 = scmp.lt.s32.totalorder %s14, 1
        %s97 = scalar_select %p96, %s14, 1
        %p98 = scmp.lt.s32.totalorder %s95, 1
        %s99 = scalar_select %p98, %s95, 1
        %s100 = smul.addr %s97, 8
        %s101 = sadd.s32 %s99, %s100
        %s102 = smul.addr %s101, 4
        %s103 = scalar_lea.vmem %s0, %s102
        %s104 = smul.u32 2, %s15
      $region20: #{dconv_forward.2} parent=15 // pred_fallthru
        _
    $region16: #{dconv_forward.2} parent=5 // pred_fallthru
      _
    %p105 = scmp.le.s32.totalorder 1, %s7
    %p106 = scmp.lt.s32.totalorder %s7, 3
    %p107 = pnand %p105, %p106
    %p108 = pneg %p107
    // Predicated region
    $region21: #{dconv_forward.2} parent=5 // pred_check
      _
    $region22: #{dconv_forward.2} parent=5 // pred_check_branch
      %110 = sbr.rel (%p107) target = $region24
    $region23: #{dconv_forward.2} parent=5 // pred_region
      %s111 = ssub.s32 %s7, 1
      %s112 = smul.u32 2, %s17
      %p113 = scmp.lt.s32.totalorder %s16, 1
      %s114 = scalar_select %p113, %s16, 1
      %p115 = scmp.lt.s32.totalorder %s112, 1
      %s116 = scalar_select %p115, %s112, 1
      %s117 = smul.addr %s114, 8
      %s118 = sadd.s32 %s116, %s117
      %s119 = smul.addr %s118, 4
      %s120 = scalar_lea.vmem %s0, %s119
      %p121 = pneg %p47
      %p122 = pneg %p44
      %p123 = pneg %p73
      %p124 = pneg %p70
      %p125 = scmp.lt.s32.totalorder %s16, 1
      %s126 = scalar_select %p125, %s16, 1
      %s127 = smul.addr %s126, 4
      %s128 = smul.addr %s127, 8
      %s129 = scalar_lea.vmem %s1, %s128
      %s130 = smul.u32 2, %s17
      %p131 = scmp.lt.s32.totalorder %s16, 1
      %s132 = scalar_select %p131, %s16, 1
      %p133 = scmp.lt.s32.totalorder %s130, 1
      %s134 = scalar_select %p133, %s130, 1
      %s135 = smul.addr %s132, 8
      %s136 = sadd.s32 %s134, %s135
      %s137 = smul.addr %s136, 4
      %s138 = scalar_lea.vmem %s0, %s137
      %s139 = smul.u32 2, %s17
      %p140 = scmp.lt.s32.totalorder %s16, 1
      %s141 = scalar_select %p140, %s16, 1
      %s142 = smul.addr %s141, 4
      %s143 = smul.addr %s142, 8
      %s144 = scalar_lea.vmem %s1, %s143
      %v145 = vld [vmem:[%s138] sm:$0xff]
      %v146 = vld [vmem:[%s138 + $0x8] sm:$0xff]
      %v147 = vld [vmem:[%s138 + $0x10] sm:$0xff]
      %v148 = vld [vmem:[%s138 + $0x18] sm:$0xff]
      %v149 = vunpack.c.l.bf16 %v145
      %v150 = vunpack.c.h.bf16 %v145
      %v151 = vunpack.c.l.bf16 %v146
      %v152 = vunpack.c.h.bf16 %v146
      %v153 = vunpack.c.l.bf16 %v147
      %v154 = vunpack.c.h.bf16 %v147
      %v155 = vunpack.c.l.bf16 %v148
      %v156 = vunpack.c.h.bf16 %v148
      %p157 = scmp.eq.s32.totalorder %s17, 0
      // Predicated region
      $region25: #{dconv_forward.2} parent=23 // pred_check
        %p158 = pneg %p157
      $region26: #{dconv_forward.2} parent=23 // pred_check_branch
        %160 = sbr.rel (%p158) target = $region28
      $region27: #{dconv_forward.2} parent=23 // pred_region
        %161 = vst [vmem:[#allocation2] sm:$0xff] 0.0
        %162 = vst [vmem:[#allocation2 + $0x8] sm:$0xff] 0.0
        %163 = vst [vmem:[#allocation2 + $0x10] sm:$0xff] 0.0
        %164 = vst [vmem:[#allocation2 + $0x18] sm:$0xff] 0.0
        %165 = vst [vmem:[#allocation2 + $0x20] sm:$0xff] 0.0
        %166 = vst [vmem:[#allocation2 + $0x28] sm:$0xff] 0.0
        %167 = vst [vmem:[#allocation2 + $0x30] sm:$0xff] 0.0
        %168 = vst [vmem:[#allocation2 + $0x38] sm:$0xff] 0.0
      $region28: #{dconv_forward.2} parent=23 // pred_fallthru
        _
      %v169 = vld [vmem:[#allocation2] sm:$0xff]
      %v170 = vld [vmem:[#allocation2 + $0x8] sm:$0xff]
      %v171 = vld [vmem:[#allocation2 + $0x10] sm:$0xff]
      %v172 = vld [vmem:[#allocation2 + $0x18] sm:$0xff]
      %v173 = vld [vmem:[#allocation2 + $0x20] sm:$0xff]
      %v174 = vld [vmem:[#allocation2 + $0x28] sm:$0xff]
      %v175 = vld [vmem:[#allocation2 + $0x30] sm:$0xff]
      %v176 = vld [vmem:[#allocation2 + $0x38] sm:$0xff]
      %v177 = vadd.f32 %v169, %v149
      %v178 = vadd.f32 %v170, %v150
      %v179 = vadd.f32 %v171, %v151
      %v180 = vadd.f32 %v172, %v152
      %v181 = vadd.f32 %v173, %v153
      %v182 = vadd.f32 %v174, %v154
      %v183 = vadd.f32 %v175, %v155
      %v184 = vadd.f32 %v176, %v156
      %185 = vst [vmem:[#allocation2] sm:$0xff] %v177
      %186 = vst [vmem:[#allocation2 + $0x8] sm:$0xff] %v178
      %187 = vst [vmem:[#allocation2 + $0x10] sm:$0xff] %v179
      %188 = vst [vmem:[#allocation2 + $0x18] sm:$0xff] %v180
      %189 = vst [vmem:[#allocation2 + $0x20] sm:$0xff] %v181
      %190 = vst [vmem:[#allocation2 + $0x28] sm:$0xff] %v182
      %191 = vst [vmem:[#allocation2 + $0x30] sm:$0xff] %v183
      %192 = vst [vmem:[#allocation2 + $0x38] sm:$0xff] %v184
      // Predicated region
      $region29: #{dconv_forward.2} parent=23 // pred_check
        %p193 = pneg %p157
      $region30: #{dconv_forward.2} parent=23 // pred_check_branch
        %195 = sbr.rel (%p193) target = $region32
      $region31: #{dconv_forward.2} parent=23 // pred_region
        %v196 = vld [vmem:[#allocation2] sm:$0xff]
        %v197 = vld [vmem:[#allocation2 + $0x8] sm:$0xff]
        %v198 = vld [vmem:[#allocation2 + $0x10] sm:$0xff]
        %v199 = vld [vmem:[#allocation2 + $0x18] sm:$0xff]
        %v200 = vld [vmem:[#allocation2 + $0x20] sm:$0xff]
        %v201 = vld [vmem:[#allocation2 + $0x28] sm:$0xff]
        %v202 = vld [vmem:[#allocation2 + $0x30] sm:$0xff]
        %v203 = vld [vmem:[#allocation2 + $0x38] sm:$0xff]
        %v204 = vadd.f32 %v196, %v197
        %205 = vadd.xlane.f32.xlu0 %v204
        %v206 = vpop.xlane.xlu0 %205
        %v207 = vadd.f32 %v198, %v199
        %208 = vadd.xlane.f32.xlu0 %v207
        %v209 = vpop.xlane.xlu0 %208
        %v210 = vadd.f32 %v200, %v201
        %211 = vadd.xlane.f32.xlu0 %v210
        %v212 = vpop.xlane.xlu0 %211
        %v213 = vadd.f32 %v202, %v203
        %214 = vadd.xlane.f32.xlu0 %v213
        %v215 = vpop.xlane.xlu0 %214
        %v216 = vmul.f32 %v206, 0.00390625
        %v217 = vmul.f32 %v209, 0.00390625
        %v218 = vmul.f32 %v212, 0.00390625
        %v219 = vmul.f32 %v215, 0.00390625
        %vm220 = vcmask 7168
        %221 = vst.msk [vmem:[%s144] sm:$0xff] %vm220, %v216
        %222 = vst.msk [vmem:[%s144 + $0x8] sm:$0xff] %vm220, %v217
        %223 = vst.msk [vmem:[%s144 + $0x10] sm:$0xff] %vm220, %v218
        %224 = vst.msk [vmem:[%s144 + $0x18] sm:$0xff] %vm220, %v219
      $region32: #{dconv_forward.2} parent=23 // pred_fallthru
        _
      %p225 = scmp.lt.s32.totalorder %s16, 1
      %s226 = scalar_select %p225, %s16, 1
      %s227 = smul.addr %s226, 4
      %s228 = smul.addr %s227, 8
      %s229 = scalar_lea.vmem %s1, %s228
      // Predicated region
      $region33: #{dconv_forward.2} parent=23 // pred_check
        %p230 = pneg %p70
      $region34: #{dconv_forward.2} parent=23 // pred_check_branch
        %232 = sbr.rel (%p230) target = $region36
      $region35: #{dconv_forward.2} parent=23 // pred_region
        _
      $region36: #{dconv_forward.2} parent=23 // pred_fallthru
        _
    $region24: #{dconv_forward.2} parent=5 // pred_fallthru
      _
    %p233 = scmp.le.s32.totalorder 2, %s7
    // Predicated region
    $region37: #{dconv_forward.2} parent=5 // pred_check
      %p234 = pneg %p233
    $region38: #{dconv_forward.2} parent=5 // pred_check_branch
      %236 = sbr.rel (%p234) target = $region40
    $region39: #{dconv_forward.2} parent=5 // pred_region
      %s237 = ssub.s32 %s7, 2
      // Predicated region
      $region41: #{dconv_forward.2} parent=39 // pred_check
        %p238 = pneg %p76
      $region42: #{dconv_forward.2} parent=39 // pred_check_branch
        %240 = sbr.rel (%p238) target = $region44
      $region43: #{dconv_forward.2} parent=39 // pred_region
        %p241 = scmp.lt.s32.totalorder %s18, 1
        %s242 = scalar_select %p241, %s18, 1
        %s243 = smul.addr %s242, 4
        %s244 = smul.addr %s243, 8
        %s245 = scalar_lea.vmem %s1, %s244
      $region44: #{dconv_forward.2} parent=39 // pred_fallthru
        _
    $region40: #{dconv_forward.2} parent=5 // pred_fallthru
      _
  $region6: #{dconv_forward.2} parent=0 // loop_footer
    %s11 = sadd.s32 1, %s7
  $region7: #{dconv_forward.2} parent=0 // loop_footer_branch
    %6 = sbr.rel target = $region3
  $region8: #{dconv_forward.2} parent=0 // loop_exit
    _

// kernel: dconv_forward.3
$region0: #{dconv_forward.3}
  #allocation0 [shape = 'u32[]', space=smem, size = 0x4, offset = 0x4, fixed_abs, tag = 'smem constant byte address 0x4 - core index']
  #allocation1 [shape = 'u32[144,128]{1,0:T(1,128)}', space=vmem, size = 0x12000, scoped, tag = 'internal scratch']
  %s0 = inlined_call_operand.vmem [shape: bf16[2,64,32], index: 0, kind: input, shape index: {}]
  %s1 = inlined_call_operand.vmem [shape: f32[2,64,1], index: 1, kind: input, shape index: {}]
  %s2 = inlined_call_operand.vmem [shape: bf16[2,32,256], index: 2, kind: input, shape index: {}]
  %s3 = inlined_call_operand.vmem [shape: bf16[2,64,256], index: 3, kind: output, shape index: {}]
  %s4 = sld [smem:[#allocation0]]
  $region45: #{dconv_forward.3} parent=0
    _
  %s6 = ssub.s32 1, %s4
  %s7 = scalar_select 0, %s6, %s4
  loop: start=0, step=1, limit=4
  $region2: #{dconv_forward.3} parent=0 // loop_pre_header
    _
  $region3: #{dconv_forward.3} parent=0 // loop_header
    %s9 = sphi 0, %s13
    %p10 = scmp.ge.s32.totalorder %s9, 4
    %s16 = sphi 0, %s28
    %s17 = sphi 0, %s24
    %s18 = sphi 0, %s16
    %s19 = sphi 0, %s17
    %s20 = sphi 0, %s18
    %s21 = sphi 0, %s19
    %s31 = sphi 0, %s33
    %s34 = sphi 0, %s31
    %s35 = sphi 0, %s34
    %s51 = sphi 0, %s35
    %s57 = sphi 0, %s59
    %s60 = sphi 0, %s57
    %s61 = sphi 0, %s60
    %s77 = sphi 0, %s61
    %s85 = sphi 0, %s87
    %s88 = sphi 0, %s85
    %s89 = sphi 0, %s88
    %s105 = sphi 0, %s89
    %s113 = sphi 0, %s115
    %s116 = sphi 0, %s113
    %s117 = sphi 0, %s116
    %s133 = sphi 0, %s117
  $region4: #{dconv_forward.3} parent=0 // loop_header_branch
    %12 = sbr.rel (%p10) target = $region8
  $region5: #{dconv_forward.3} parent=0 // loop_body
    %s14 = ssub.s32 %s9, 1
    %s15 = ssub.s32 %s9, 2
    %s22 = sadd.s32 1, %s17
    %p23 = scmp.ge.s32.totalorder %s22, 1
    %s24 = scalar_select %p23, 0, %s22
    %s25 = sadd.s32 1, %s16
    %s26 = scalar_select %p23, %s25, %s16
    %p27 = scmp.ge.s32.totalorder %s26, 2
    %s28 = scalar_select %p27, 0, %s26
    %s29 = ssub.s32 %s16, %s28
    %p30 = scmp.eq.s32.totalorder %s29, 0
    %s32 = sadd.s32 %s31, 1
    %s33 = scalar_select %p30, %s31, %s32
    %p36 = pneg %p30
    %p37 = scmp.eq.s32.totalorder %s9, 1
    %p38 = por %p36, %p37
    %p39 = scmp.ne.s32.totalorder %s31, %s34
    %p40 = scmp.eq.s32.totalorder %s9, 0
    %p41 = por %p39, %p40
    %p42 = scmp.ne.s32.totalorder %s31, %s34
    %p43 = scmp.eq.s32.totalorder %s14, 1
    %p44 = por %p42, %p43
    %p45 = scmp.ne.s32.totalorder %s34, %s35
    %p46 = scmp.eq.s32.totalorder %s14, 0
    %p47 = por %p45, %p46
    %p48 = scmp.ne.s32.totalorder %s34, %s35
    %p49 = scmp.eq.s32.totalorder %s15, 1
    %p50 = por %p48, %p49
    %p52 = scmp.ne.s32.totalorder %s35, %s51
    %p53 = scmp.eq.s32.totalorder %s15, 0
    %p54 = por %p52, %p53
    %s55 = ssub.s32 %s16, %s28
    %p56 = scmp.eq.s32.totalorder %s55, 0
    %s58 = sadd.s32 %s57, 1
    %s59 = scalar_select %p56, %s57, %s58
    %p62 = pneg %p56
    %p63 = scmp.eq.s32.totalorder %s9, 1
    %p64 = por %p62, %p63
    %p65 = scmp.ne.s32.totalorder %s57, %s60
    %p66 = scmp.eq.s32.totalorder %s9, 0
    %p67 = por %p65, %p66
    %p68 = scmp.ne.s32.totalorder %s57, %s60
    %p69 = scmp.eq.s32.totalorder %s14, 1
    %p70 = por %p68, %p69
    %p71 = scmp.ne.s32.totalorder %s60, %s61
    %p72 = scmp.eq.s32.totalorder %s14, 0
    %p73 = por %p71, %p72
    %p74 = scmp.ne.s32.totalorder %s60, %s61
    %p75 = scmp.eq.s32.totalorder %s15, 1
    %p76 = por %p74, %p75
    %p78 = scmp.ne.s32.totalorder %s61, %s77
    %p79 = scmp.eq.s32.totalorder %s15, 0
    %p80 = por %p78, %p79
    %s81 = ssub.s32 %s16, %s28
    %s82 = ssub.s32 %s17, %s24
    %s83 = sor.u32 %s81, %s82
    %p84 = scmp.eq.s32.totalorder %s83, 0
    %s86 = sadd.s32 %s85, 1
    %s87 = scalar_select %p84, %s85, %s86
    %p90 = pneg %p84
    %p91 = scmp.eq.s32.totalorder %s9, 1
    %p92 = por %p90, %p91
    %p93 = scmp.ne.s32.totalorder %s85, %s88
    %p94 = scmp.eq.s32.totalorder %s9, 0
    %p95 = por %p93, %p94
    %p96 = scmp.ne.s32.totalorder %s85, %s88
    %p97 = scmp.eq.s32.totalorder %s14, 1
    %p98 = por %p96, %p97
    %p99 = scmp.ne.s32.totalorder %s88, %s89
    %p100 = scmp.eq.s32.totalorder %s14, 0
    %p101 = por %p99, %p100
    %p102 = scmp.ne.s32.totalorder %s88, %s89
    %p103 = scmp.eq.s32.totalorder %s15, 1
    %p104 = por %p102, %p103
    %p106 = scmp.ne.s32.totalorder %s89, %s105
    %p107 = scmp.eq.s32.totalorder %s15, 0
    %p108 = por %p106, %p107
    %s109 = ssub.s32 %s16, %s28
    %s110 = ssub.s32 %s17, %s24
    %s111 = sor.u32 %s109, %s110
    %p112 = scmp.eq.s32.totalorder %s111, 0
    %s114 = sadd.s32 %s113, 1
    %s115 = scalar_select %p112, %s113, %s114
    %p118 = pneg %p112
    %p119 = scmp.eq.s32.totalorder %s9, 1
    %p120 = por %p118, %p119
    %p121 = scmp.ne.s32.totalorder %s113, %s116
    %p122 = scmp.eq.s32.totalorder %s9, 0
    %p123 = por %p121, %p122
    %p124 = scmp.ne.s32.totalorder %s113, %s116
    %p125 = scmp.eq.s32.totalorder %s14, 1
    %p126 = por %p124, %p125
    %p127 = scmp.ne.s32.totalorder %s116, %s117
    %p128 = scmp.eq.s32.totalorder %s14, 0
    %p129 = por %p127, %p128
    %p130 = scmp.ne.s32.totalorder %s116, %s117
    %p131 = scmp.eq.s32.totalorder %s15, 1
    %p132 = por %p130, %p131
    %p134 = scmp.ne.s32.totalorder %s117, %s133
    %p135 = scmp.eq.s32.totalorder %s15, 0
    %p136 = por %p134, %p135
    %p137 = scmp.le.s32.totalorder 1, %s9
    %p138 = scmp.lt.s32.totalorder %s9, 3
    %p139 = pnand %p137, %p138
    %p140 = pneg %p139
    // Predicated region
    $region9: #{dconv_forward.3} parent=5 // pred_check
      _
    $region10: #{dconv_forward.3} parent=5 // pred_check_branch
      %142 = sbr.rel (%p139) target = $region12
    $region11: #{dconv_forward.3} parent=5 // pred_region
      %s143 = ssub.s32 %s9, 1
    $region12: #{dconv_forward.3} parent=5 // pred_fallthru
      _
    %p144 = scmp.lt.s32.totalorder %s9, 2
    // Predicated region
    $region13: #{dconv_forward.3} parent=5 // pred_check
      %p145 = pneg %p144
    $region14: #{dconv_forward.3} parent=5 // pred_check_branch
      %147 = sbr.rel (%p145) target = $region16
    $region15: #{dconv_forward.3} parent=5 // pred_region
      // Predicated region
      $region17: #{dconv_forward.3} parent=15 // pred_check
        %p148 = pneg %p41
      $region18: #{dconv_forward.3} parent=15 // pred_check_branch
        %150 = sbr.rel (%p148) target = $region20
      $region19: #{dconv_forward.3} parent=15 // pred_region
        %p151 = scmp.lt.s32.totalorder %s16, 1
        %s152 = scalar_select %p151, %s16, 1
        %s153 = smul.addr %s152, 8
        %s154 = smul.addr %s153, 4
        %s155 = scalar_lea.vmem %s0, %s154
      $region20: #{dconv_forward.3} parent=15 // pred_fallthru
        _
      // Predicated region
      $region21: #{dconv_forward.3} parent=15 // pred_check
        %p156 = pneg %p67
      $region22: #{dconv_forward.3} parent=15 // pred_check_branch
        %158 = sbr.rel (%p156) target = $region24
      $region23: #{dconv_forward.3} parent=15 // pred_region
        %p159 = scmp.lt.s32.totalorder %s16, 1
        %s160 = scalar_select %p159, %s16, 1
        %s161 = smul.addr %s160, 8
        %s162 = smul.addr %s161, 8
        %s163 = scalar_lea.vmem %s1, %s162
      $region24: #{dconv_forward.3} parent=15 // pred_fallthru
        _
      // Predicated region
      $region25: #{dconv_forward.3} parent=15 // pred_check
        %p164 = pneg %p95
      $region26: #{dconv_forward.3} parent=15 // pred_check_branch
        %166 = sbr.rel (%p164) target = $region28
      $region27: #{dconv_forward.3} parent=15 // pred_region
        %s167 = smul.u32 2, %s17
        %p168 = scmp.lt.s32.totalorder %s16, 1
        %s169 = scalar_select %p168, %s16, 1
        %p170 = scmp.lt.s32.totalorder %s167, 1
        %s171 = scalar_select %p170, %s167, 1
        %s172 = smul.addr %s169, 8
        %s173 = sadd.s32 %s171, %s172
        %s174 = smul.addr %s173, 4
        %s175 = scalar_lea.vmem %s2, %s174
        %s176 = smul.u32 2, %s17
      $region28: #{dconv_forward.3} parent=15 // pred_fallthru
        _
    $region16: #{dconv_forward.3} parent=5 // pred_fallthru
      _
    %p177 = scmp.le.s32.totalorder 1, %s9
    %p178 = scmp.lt.s32.totalorder %s9, 3
    %p179 = pnand %p177, %p178
    %p180 = pneg %p179
    // Predicated region
    $region29: #{dconv_forward.3} parent=5 // pred_check
      _
    $region30: #{dconv_forward.3} parent=5 // pred_check_branch
      %182 = sbr.rel (%p179) target = $region32
    $region31: #{dconv_forward.3} parent=5 // pred_region
      %s183 = ssub.s32 %s9, 1
      %p184 = scmp.lt.s32.totalorder %s18, 1
      %s185 = scalar_select %p184, %s18, 1
      %s186 = smul.addr %s185, 8
      %s187 = smul.addr %s186, 4
      %s188 = scalar_lea.vmem %s0, %s187
      %p189 = pneg %p47
      %p190 = pneg %p44
      %p191 = scmp.lt.s32.totalorder %s18, 1
      %s192 = scalar_select %p191, %s18, 1
      %s193 = smul.addr %s192, 8
      %s194 = smul.addr %s193, 8
      %s195 = scalar_lea.vmem %s1, %s194
      %p196 = pneg %p73
      %p197 = pneg %p70
      %s198 = smul.u32 2, %s19
      %p199 = scmp.lt.s32.totalorder %s18, 1
      %s200 = scalar_select %p199, %s18, 1
      %p201 = scmp.lt.s32.totalorder %s198, 1
      %s202 = scalar_select %p201, %s198, 1
      %s203 = smul.addr %s200, 8
      %s204 = sadd.s32 %s202, %s203
      %s205 = smul.addr %s204, 4
      %s206 = scalar_lea.vmem %s2, %s205
      %p207 = pneg %p101
      %p208 = pneg %p98
      %p209 = pneg %p129
      %p210 = pneg %p126
      %s211 = smul.u32 2, %s19
      %p212 = scmp.lt.s32.totalorder %s18, 1
      %s213 = scalar_select %p212, %s18, 1
      %p214 = scmp.lt.s32.totalorder %s211, 1
      %s215 = scalar_select %p214, %s211, 1
      %s216 = smul.addr %s213, 16
      %s217 = sadd.s32 %s215, %s216
      %s218 = smul.addr %s217, 4
      %s219 = scalar_lea.vmem %s3, %s218
      %p220 = scmp.lt.s32.totalorder %s18, 1
      %s221 = scalar_select %p220, %s18, 1
      %s222 = smul.addr %s221, 8
      %s223 = smul.addr %s222, 4
      %s224 = scalar_lea.vmem %s0, %s223
      %p225 = scmp.lt.s32.totalorder %s18, 1
      %s226 = scalar_select %p225, %s18, 1
      %s227 = smul.addr %s226, 8
      %s228 = smul.addr %s227, 8
      %s229 = scalar_lea.vmem %s1, %s228
      %s230 = smul.u32 2, %s19
      %p231 = scmp.lt.s32.totalorder %s18, 1
      %s232 = scalar_select %p231, %s18, 1
      %p233 = scmp.lt.s32.totalorder %s230, 1
      %s234 = scalar_select %p233, %s230, 1
      %s235 = smul.addr %s232, 8
      %s236 = sadd.s32 %s234, %s235
      %s237 = smul.addr %s236, 4
      %s238 = scalar_lea.vmem %s2, %s237
      %s239 = smul.u32 2, %s19
      %s240 = smul.u32 2, %s19
      %p241 = scmp.lt.s32.totalorder %s18, 1
      %s242 = scalar_select %p241, %s18, 1
      %p243 = scmp.lt.s32.totalorder %s240, 1
      %s244 = scalar_select %p243, %s240, 1
      %s245 = smul.addr %s242, 16
      %s246 = sadd.s32 %s244, %s245
      %s247 = smul.addr %s246, 4
      %s248 = scalar_lea.vmem %s3, %s247
      %s249 = smul.u32 2, %s19
      %v251 = vld [vmem:[%s224] sm:$0xf]
      %v252 = vld [vmem:[%s224 + $0x4] sm:$0xf]
      %v253 = vld [vmem:[%s224 + $0x8] sm:$0xf]
      %v254 = vld [vmem:[%s224 + $0xc] sm:$0xf]
      %v255 = vld [vmem:[%s224 + $0x10] sm:$0xf]
      %v256 = vld [vmem:[%s224 + $0x14] sm:$0xf]
      %v257 = vld [vmem:[%s224 + $0x18] sm:$0xf]
      %v258 = vld [vmem:[%s224 + $0x1c] sm:$0xf]
      %v259 = vld [vmem:[%s238] sm:$0xff]
      %v260 = vld [vmem:[%s238 + $0x8] sm:$0xff]
      %v261 = vld [vmem:[%s238 + $0x10] sm:$0xff]
      %v262 = vld [vmem:[%s238 + $0x18] sm:$0xff]
      %v263 = vld [vmem:[%s229] sm:$0xff]
      %v264 = vld [vmem:[%s229 + $0x8] sm:$0xff]
      %v265 = vld [vmem:[%s229 + $0x10] sm:$0xff]
      %v266 = vld [vmem:[%s229 + $0x18] sm:$0xff]
      %v267 = vld [vmem:[%s229 + $0x20] sm:$0xff]
      %v268 = vld [vmem:[%s229 + $0x28] sm:$0xff]
      %v269 = vld [vmem:[%s229 + $0x30] sm:$0xff]
      %v270 = vld [vmem:[%s229 + $0x38] sm:$0xff]
      %272 = vset.pattern.permute.xlu0 0
      %273 = vperm.xlu0 %272, %v263
      %v274 = vpop.permute.xlu0 %273
      %277 = vset.pattern.permute.xlu0 0
      %278 = vperm.xlu0 %277, %v264
      %v279 = vpop.permute.xlu0 %278
      %282 = vset.pattern.permute.xlu0 0
      %283 = vperm.xlu0 %282, %v265
      %v284 = vpop.permute.xlu0 %283
      %287 = vset.pattern.permute.xlu0 0
      %288 = vperm.xlu0 %287, %v266
      %v289 = vpop.permute.xlu0 %288
      %292 = vset.pattern.permute.xlu0 0
      %293 = vperm.xlu0 %292, %v267
      %v294 = vpop.permute.xlu0 %293
      %297 = vset.pattern.permute.xlu0 0
      %298 = vperm.xlu0 %297, %v268
      %v299 = vpop.permute.xlu0 %298
      %302 = vset.pattern.permute.xlu0 0
      %303 = vperm.xlu0 %302, %v269
      %v304 = vpop.permute.xlu0 %303
      %307 = vset.pattern.permute.xlu0 0
      %308 = vperm.xlu0 %307, %v270
      %v309 = vpop.permute.xlu0 %308
      %v319 = vunpack.c.l.b16 %v251
      %v320 = vunpack.c.l.b16 %v252
      %v321 = vunpack.c.l.b16 %v253
      %v322 = vunpack.c.l.b16 %v254
      %v323 = vunpack.c.l.b16 %v255
      %v324 = vunpack.c.l.b16 %v256
      %v325 = vunpack.c.l.b16 %v257
      %v326 = vunpack.c.l.b16 %v258
      %v327 = vpack.c.b16 %v320, %v319
      %v328 = vpack.c.b16 %v322, %v321
      %v329 = vpack.c.b16 %v324, %v323
      %v330 = vpack.c.b16 %v326, %v325
      %v335 = vunpack.c.l.b16 %v259
      %v336 = vunpack.c.h.b16 %v259
      %v337 = vunpack.c.l.b16 %v260
      %v338 = vunpack.c.h.b16 %v260
      %v339 = vunpack.c.l.b16 %v261
      %v340 = vunpack.c.h.b16 %v261
      %v341 = vunpack.c.l.b16 %v262
      %v342 = vunpack.c.h.b16 %v262
      %v343 = vpack.c.b16 %v337, %v335
      %v344 = vpack.c.b16 %v338, %v336
      %v345 = vpack.c.b16 %v341, %v339
      %v346 = vpack.c.b16 %v342, %v340
      %vm351 = vcmask 261120
      %v353 = vsel %vm351, %v327, 0
      %v356 = vsel %vm351, %v328, 0
      %v359 = vsel %vm351, %v329, 0
      %v362 = vsel %vm351, %v330, 0
      %364 = vmatprep.subr.bf16.mxu0 0
      %365 = vmatpush1.bf16.msra.mxu0 0
      %366 = vmatprep.subr.bf16.mxu0 0
      %367 = vmatpush1.bf16.msra.mxu0 0
      %368 = vmatprep.subr.bf16.mxu0 0
      %369 = vmatpush1.bf16.msra.mxu0 0
      %370 = vmatprep.subr.bf16.mxu0 0
      %371 = vmatpush1.bf16.msra.mxu0 0
      %372 = vmatprep.subr.bf16.mxu0 0
      %373 = vmatpush1.bf16.msra.mxu0 0
      %374 = vmatprep.subr.bf16.mxu0 0
      %375 = vmatpush1.bf16.msra.mxu0 0
      %376 = vmatprep.subr.bf16.mxu0 %v346
      %377 = vmatpush1.bf16.msra.mxu0 %v345
      %378 = vmatprep.subr.bf16.mxu0 %v344
      %379 = vmatpush1.bf16.msra.mxu0 %v343
      %380 = vmatprep.subr.bf16.mxu0 0
      %381 = vmatpush2.bf16.msra.mxu0 0
      %382 = vmatprep.subr.bf16.mxu0 0
      %383 = vmatpush2.bf16.msra.mxu0 0
      %384 = vmatprep.subr.bf16.mxu0 0
      %385 = vmatpush2.bf16.msra.mxu0 0
      %386 = vmatprep.subr.bf16.mxu0 0
      %387 = vmatpush2.bf16.msra.mxu0 0
      %388 = vmatprep.subr.bf16.mxu0 0
      %389 = vmatpush2.bf16.msra.mxu0 0
      %390 = vmatprep.subr.bf16.mxu0 0
      %391 = vmatpush2.bf16.msra.mxu0 0
      %392 = vmatprep.subr.bf16.mxu0 0
      %393 = vmatpush2.bf16.msra.mxu0 0
      %394 = vmatprep.subr.bf16.mxu0 0
      %395 = vmatpush2.bf16.msra.mxu0 0
      %396 = vmatprep.mubr.bf16.mxu0 0
      %397 = vmatmul.mubr.bf16.gmra.mxu0 %v353
      %v398 = vpop.f32.mrf.mxu0
      %v399 = vadd.f32 %v274, %v398
      %v400 = vpop.f32.mrf.mxu0
      %v401 = vadd.f32 %v274, %v400
      %v402 = vpop.f32.mrf.mxu0
      %v403 = vadd.f32 %v279, %v402
      %v404 = vpop.f32.mrf.mxu0
      %v405 = vadd.f32 %v279, %v404
      %406 = vmatprep.mubr.bf16.mxu0 0
      %407 = vmatmul.mubr.bf16.gmra.mxu0 %v356
      %v408 = vpop.f32.mrf.mxu0
      %v409 = vadd.f32 %v284, %v408
      %v410 = vpop.f32.mrf.mxu0
      %v411 = vadd.f32 %v284, %v410
      %v412 = vpop.f32.mrf.mxu0
      %v413 = vadd.f32 %v289, %v412
      %v414 = vpop.f32.mrf.mxu0
      %v415 = vadd.f32 %v289, %v414
      %416 = vmatprep.mubr.bf16.mxu0 0
      %417 = vmatmul.mubr.bf16.gmra.mxu0 %v359
      %v418 = vpop.f32.mrf.mxu0
      %v419 = vadd.f32 %v294, %v418
      %v420 = vpop.f32.mrf.mxu0
      %v421 = vadd.f32 %v294, %v420
      %v422 = vpop.f32.mrf.mxu0
      %v423 = vadd.f32 %v299, %v422
      %v424 = vpop.f32.mrf.mxu0
      %v425 = vadd.f32 %v299, %v424
      %426 = vmatprep.mubr.bf16.mxu0 0
      %427 = vmatmul.mubr.bf16.gmra.mxu0 %v362
      %v428 = vpop.f32.mrf.mxu0
      %v429 = vadd.f32 %v304, %v428
      %v430 = vpop.f32.mrf.mxu0
      %v431 = vadd.f32 %v304, %v430
      %v432 = vpop.f32.mrf.mxu0
      %v433 = vadd.f32 %v309, %v432
      %v434 = vpop.f32.mrf.mxu0
      %v435 = vadd.f32 %v309, %v434
      %436 = vdwg.mxu0
      %v437 = vpack.c.bf16 %v403, %v399
      %v438 = vpack.c.bf16 %v405, %v401
      %v439 = vpack.c.bf16 %v413, %v409
      %v440 = vpack.c.bf16 %v415, %v411
      %v441 = vpack.c.bf16 %v423, %v419
      %v442 = vpack.c.bf16 %v425, %v421
      %v443 = vpack.c.bf16 %v433, %v429
      %v444 = vpack.c.bf16 %v435, %v431
      %v453 = vunpack.c.l.b16 %v437
      %v454 = vunpack.c.l.b16 %v438
      %v455 = vunpack.c.h.b16 %v437
      %v456 = vunpack.c.h.b16 %v438
      %v457 = vunpack.c.l.b16 %v439
      %v458 = vunpack.c.l.b16 %v440
      %v459 = vunpack.c.h.b16 %v439
      %v460 = vunpack.c.h.b16 %v440
      %v461 = vunpack.c.l.b16 %v441
      %v462 = vunpack.c.l.b16 %v442
      %v463 = vunpack.c.h.b16 %v441
      %v464 = vunpack.c.h.b16 %v442
      %v465 = vunpack.c.l.b16 %v443
      %v466 = vunpack.c.l.b16 %v444
      %v467 = vunpack.c.h.b16 %v443
      %v468 = vunpack.c.h.b16 %v444
      %v469 = vpack.c.b16 %v454, %v453
      %v470 = vpack.c.b16 %v456, %v455
      %v471 = vpack.c.b16 %v458, %v457
      %v472 = vpack.c.b16 %v460, %v459
      %v473 = vpack.c.b16 %v462, %v461
      %v474 = vpack.c.b16 %v464, %v463
      %v475 = vpack.c.b16 %v466, %v465
      %v476 = vpack.c.b16 %v468, %v467
      %485 = vst [vmem:[%s248] sm:$0xff] %v469
      %486 = vst [vmem:[%s248 + $0x8] sm:$0xff] %v470
      %487 = vst [vmem:[%s248 + $0x10] sm:$0xff] %v471
      %488 = vst [vmem:[%s248 + $0x18] sm:$0xff] %v472
      %489 = vst [vmem:[%s248 + $0x20] sm:$0xff] %v473
      %490 = vst [vmem:[%s248 + $0x28] sm:$0xff] %v474
      %491 = vst [vmem:[%s248 + $0x30] sm:$0xff] %v475
      %492 = vst [vmem:[%s248 + $0x38] sm:$0xff] %v476
      %s493 = smul.u32 2, %s19
      %p494 = scmp.lt.s32.totalorder %s18, 1
      %s495 = scalar_select %p494, %s18, 1
      %p496 = scmp.lt.s32.totalorder %s493, 1
      %s497 = scalar_select %p496, %s493, 1
      %s498 = smul.addr %s495, 16
      %s499 = sadd.s32 %s497, %s498
      %s500 = smul.addr %s499, 4
      %s501 = scalar_lea.vmem %s3, %s500
      // Predicated region
      $region33: #{dconv_forward.3} parent=31 // pred_check
        %p502 = pneg %p126
      $region34: #{dconv_forward.3} parent=31 // pred_check_branch
        %504 = sbr.rel (%p502) target = $region36
      $region35: #{dconv_forward.3} parent=31 // pred_region
        %s505 = smul.u32 2, %s19
      $region36: #{dconv_forward.3} parent=31 // pred_fallthru
        _
    $region32: #{dconv_forward.3} parent=5 // pred_fallthru
      _
    %p506 = scmp.le.s32.totalorder 2, %s9
    // Predicated region
    $region37: #{dconv_forward.3} parent=5 // pred_check
      %p507 = pneg %p506
    $region38: #{dconv_forward.3} parent=5 // pred_check_branch
      %509 = sbr.rel (%p507) target = $region40
    $region39: #{dconv_forward.3} parent=5 // pred_region
      %s510 = ssub.s32 %s9, 2
      // Predicated region
      $region41: #{dconv_forward.3} parent=39 // pred_check
        %p511 = pneg %p132
      $region42: #{dconv_forward.3} parent=39 // pred_check_branch
        %513 = sbr.rel (%p511) target = $region44
      $region43: #{dconv_forward.3} parent=39 // pred_region
        %s514 = smul.u32 2, %s21
        %p515 = scmp.lt.s32.totalorder %s20, 1
        %s516 = scalar_select %p515, %s20, 1
        %p517 = scmp.lt.s32.totalorder %s514, 1
        %s518 = scalar_select %p517, %s514, 1
        %s519 = smul.addr %s516, 16
        %s520 = sadd.s32 %s518, %s519
        %s521 = smul.addr %s520, 4
        %s522 = scalar_lea.vmem %s3, %s521
      $region44: #{dconv_forward.3} parent=39 // pred_fallthru
        _
    $region40: #{dconv_forward.3} parent=5 // pred_fallthru
      _
  $region6: #{dconv_forward.3} parent=0 // loop_footer
    %s13 = sadd.s32 1, %s9
  $region7: #{dconv_forward.3} parent=0 // loop_footer_branch
    %8 = sbr.rel target = $region3
  $region8: #{dconv_forward.3} parent=0 // loop_exit
    _

</llo_original>
